<compile_context>
chip_gen: v6e
topology: v6e:2x2x1
jax: 0.10.0
libtpu: 0.0.40
codegen_flags: <defaults>
</compile_context>

<pallas_src>
import jax
import jax.numpy as jnp
from jax.experimental import pallas as pl
from jax.experimental.pallas import tpu as pltpu

LANES = 128  # vreg lane width: batch elements live on the lane axis.

# Packed, pre-folded parameter layout (f32[16] in SMEM via scalar prefetch):
#   [0:4]   a_k = 0.5 * w1_k
#   [4:8]   c_k = 0.5 * b1_k
#   [8:12]  d_k = 0.5 * w2_k
#   [12]    e   = b2 + 0.5 * sum_k w2_k
#   [13:16] padding
# so that  out = e + sum_k d_k * tanh(a_k * x + c_k)
#              = b2 + sum_k w2_k * sigmoid(w1_k * x + b1_k)   (exactly)


def curvefit_kernel(params_ref, x_ref, o_ref):
    """Fused affine -> sigmoid -> affine on a lane-dense (block_rows, 128) tile.

    Per vreg: 4 tanh EUP pushes + 16 VPU ops, no MXU/XLU work, unmasked
    full-width stores.
    """
    x = x_ref[...]                                     # (block_rows, 128) f32
    # Hidden unit 0 carries the folded output bias.
    out = jnp.tanh(x * params_ref[0] + params_ref[4]) * params_ref[8] + params_ref[12]
    for k in range(1, 4):                              # unrolled hidden units
        out = out + jnp.tanh(x * params_ref[k] + params_ref[4 + k]) * params_ref[8 + k]
    o_ref[...] = out.astype(o_ref.dtype)


def _round_up(a, b):
    return pl.cdiv(a, b) * b


def curvefit_forward(x, w1, b1, w2, b2, *, max_block_rows=4096):
    """CurveFit forward pass.

    x : (N, 1) f32
    w1: (4, 1), b1: (4,)   -- nn.Linear(1, 4)
    w2: (1, 4), b2: (1,)   -- nn.Linear(4, 1)
    returns (N, 1) f32
    """
    N = x.shape[0]
    x_f32 = x.astype(jnp.float32)

    # ---- layout plumbing: batch onto the lane axis -------------------------
    if N % LANES == 0:
        # Zero-copy fast path: pure reshape, no pad, no final slice.
        rows = N // LANES
        x2d = x_f32.reshape(rows, LANES)
        ragged = False
    else:
        # TODO(synk): the ragged tail could be masked in-kernel (BoundedSlice /
        # masked store) to kill the pad+slice HBM passes; pad once for now.
        n_pad = _round_up(N, LANES)
        rows = n_pad // LANES
        x2d = jnp.pad(x_f32.reshape(-1), (0, n_pad - N)).reshape(rows, LANES)
        ragged = True

    # ---- block sizing ------------------------------------------------------
    # >= 2 (even) grid steps when there is enough work, so the "parallel" axis
    # shards across v7x's two TensorCores; otherwise one resident full-extent
    # tile.  Pallas masks the partial last block, so no row padding is needed.
    if rows >= 16:
        nb = max(2, pl.cdiv(rows, max_block_rows))
        nb += nb % 2                                   # even grid for 2 TCs
        block_rows = _round_up(pl.cdiv(rows, nb), 8)   # multiple of 8 sublanes
    else:
        block_rows = rows                              # full array dim (allowed)
    grid = (pl.cdiv(rows, block_rows),)

    # ---- pre-fold the 13 parameters (scalar-only work, negligible) ---------
    w1f = w1.reshape(4).astype(jnp.float32)
    b1f = b1.reshape(4).astype(jnp.float32)
    w2f = w2.reshape(4).astype(jnp.float32)
    b2f = b2.reshape(1).astype(jnp.float32)
    params = jnp.concatenate([
        0.5 * w1f,                                     # [0:4]   a_k
        0.5 * b1f,                                     # [4:8]   c_k
        0.5 * w2f,                                     # [8:12]  d_k
        b2f + 0.5 * jnp.sum(w2f, keepdims=True),       # [12]    e
        jnp.zeros((3,), jnp.float32),                  # [13:16] pad
    ])

    n_elems = rows * LANES
    cost = pl.CostEstimate(
        flops=16 * n_elems,
        transcendentals=4 * n_elems,
        bytes_accessed=2 * n_elems * 4,
    )

    out2d = pl.pallas_call(
        curvefit_kernel,
        out_shape=jax.ShapeDtypeStruct((rows, LANES), jnp.float32),
        grid_spec=pltpu.PrefetchScalarGridSpec(
            num_scalar_prefetch=1,
            grid=grid,
            in_specs=[
                # Lane-dense x tile; index_map also receives the prefetch ref.
                pl.BlockSpec((block_rows, LANES), lambda i, p: (i, 0)),
            ],
            out_specs=pl.BlockSpec((block_rows, LANES), lambda i, p: (i, 0)),
        ),
        compiler_params=pltpu.CompilerParams(
            dimension_semantics=("parallel",)),
        cost_estimate=cost,
    )(params, x2d)

    # Undo the layout plumbing: back to the PyTorch (N, 1) shape.
    if ragged:
        return out2d.reshape(-1)[:N].reshape(N, 1)
    return out2d.reshape(N, 1)


def curvefit_reference(x, w1, b1, w2, b2):
    h = jax.nn.sigmoid(x @ w1.T + b1)                  # (N, 4)
    return h @ w2.T + b2                               # (N, 1)


if __name__ == "__main__":
    key = jax.random.PRNGKey(0)
    k_x, k_w1, k_b1, k_w2, k_b2 = jax.random.split(key, 5)

    # Deterministic parameter init (shapes from nn.Linear(1,4) / nn.Linear(4,1)).
    bound1 = 1.0                                       # 1/sqrt(fan_in=1)
    w1 = jax.random.uniform(k_w1, (4, 1), jnp.float32, -bound1, bound1)
    b1 = jax.random.uniform(k_b1, (4,), jnp.float32, -bound1, bound1)
    bound2 = 0.5                                       # 1/sqrt(fan_in=4)
    w2 = jax.random.uniform(k_w2, (1, 4), jnp.float32, -bound2, bound2)
    b2 = jax.random.uniform(k_b2, (1,), jnp.float32, -bound2, bound2)

    # 1) Lane-aligned batch (zero-copy path, single resident tile).
    N = 256
    x = jax.random.uniform(k_x, (N, 1), jnp.float32, minval=0.0, maxval=3.0)
    out = jax.block_until_ready(curvefit_forward(x, w1, b1, w2, b2))
    ref = curvefit_reference(x, w1, b1, w2, b2)
    assert out.shape == (N, 1)
    assert jnp.allclose(out, ref, atol=1e-5, rtol=1e-5)

    # 2) Ragged batch matching the original spec: np.linspace(0, 3, num=1000).
    N2 = 1000
    x2 = jnp.linspace(0.0, 3.0, N2, dtype=jnp.float32).reshape(N2, 1)
    out2 = jax.block_until_ready(curvefit_forward(x2, w1, b1, w2, b2))
    ref2 = curvefit_reference(x2, w1, b1, w2, b2)
    assert out2.shape == (N2, 1)
    assert jnp.allclose(out2, ref2, atol=1e-5, rtol=1e-5)

    # 3) Multi-block path (rows >= 16 -> even grid, partial last block masked).
    N3 = 20 * 128 + 64                                 # ragged + 2 grid steps
    x3 = jax.random.uniform(jax.random.PRNGKey(1), (N3, 1), jnp.float32, 0.0, 3.0)
    out3 = jax.block_until_ready(curvefit_forward(x3, w1, b1, w2, b2))
    ref3 = curvefit_reference(x3, w1, b1, w2, b2)
    assert out3.shape == (N3, 1)
    assert jnp.allclose(out3, ref3, atol=1e-5, rtol=1e-5)

    print("KERNEL_OK")
</pallas_src>

<mosaic_0001>
module attributes {stable_mosaic.version = 11 : i64} {
  func.func @curvefit_kernel(%arg0: i32, %arg1: memref<16xf32, #tpu.memory_space<smem>>, %arg2: memref<2x128xf32, #tpu.memory_space<vmem>>, %arg3: memref<2x128xf32, #tpu.memory_space<vmem>>) attributes {dimension_semantics = [#tpu.dimension_semantics<parallel>], iteration_bounds = array<i64: 1>, scalar_prefetch = 1 : i64, scratch_operands = 0 : i64, tpu.core_type = #tpu.core_type<tc>, window_params = [{transform_indices = @transform_0, window_bounds = array<i64: 2, 128>}, {transform_indices = @transform_1, window_bounds = array<i64: 2, 128>}]} {
    %c0 = arith.constant 0 : index
    %c0_0 = arith.constant 0 : index
    %0 = vector.load %arg2[%c0, %c0_0] : memref<2x128xf32, #tpu.memory_space<vmem>>, vector<2x128xf32>
    %c0_1 = arith.constant 0 : index
    %1 = memref.load %arg1[%c0_1] : memref<16xf32, #tpu.memory_space<smem>>
    %2 = vector.broadcast %1 : f32 to vector<2x128xf32>
    %3 = arith.mulf %0, %2 : vector<2x128xf32>
    %c4 = arith.constant 4 : index
    %4 = memref.load %arg1[%c4] : memref<16xf32, #tpu.memory_space<smem>>
    %5 = vector.broadcast %4 : f32 to vector<2x128xf32>
    %6 = arith.addf %3, %5 : vector<2x128xf32>
    %7 = math.tanh %6 : vector<2x128xf32>
    %c8 = arith.constant 8 : index
    %8 = memref.load %arg1[%c8] : memref<16xf32, #tpu.memory_space<smem>>
    %9 = vector.broadcast %8 : f32 to vector<2x128xf32>
    %10 = arith.mulf %7, %9 : vector<2x128xf32>
    %c12 = arith.constant 12 : index
    %11 = memref.load %arg1[%c12] : memref<16xf32, #tpu.memory_space<smem>>
    %12 = vector.broadcast %11 : f32 to vector<2x128xf32>
    %13 = arith.addf %10, %12 : vector<2x128xf32>
    %c1 = arith.constant 1 : index
    %14 = memref.load %arg1[%c1] : memref<16xf32, #tpu.memory_space<smem>>
    %15 = vector.broadcast %14 : f32 to vector<2x128xf32>
    %16 = arith.mulf %0, %15 : vector<2x128xf32>
    %c5 = arith.constant 5 : index
    %17 = memref.load %arg1[%c5] : memref<16xf32, #tpu.memory_space<smem>>
    %18 = vector.broadcast %17 : f32 to vector<2x128xf32>
    %19 = arith.addf %16, %18 : vector<2x128xf32>
    %20 = math.tanh %19 : vector<2x128xf32>
    %c9 = arith.constant 9 : index
    %21 = memref.load %arg1[%c9] : memref<16xf32, #tpu.memory_space<smem>>
    %22 = vector.broadcast %21 : f32 to vector<2x128xf32>
    %23 = arith.mulf %20, %22 : vector<2x128xf32>
    %24 = arith.addf %13, %23 : vector<2x128xf32>
    %c2 = arith.constant 2 : index
    %25 = memref.load %arg1[%c2] : memref<16xf32, #tpu.memory_space<smem>>
    %26 = vector.broadcast %25 : f32 to vector<2x128xf32>
    %27 = arith.mulf %0, %26 : vector<2x128xf32>
    %c6 = arith.constant 6 : index
    %28 = memref.load %arg1[%c6] : memref<16xf32, #tpu.memory_space<smem>>
    %29 = vector.broadcast %28 : f32 to vector<2x128xf32>
    %30 = arith.addf %27, %29 : vector<2x128xf32>
    %31 = math.tanh %30 : vector<2x128xf32>
    %c10 = arith.constant 10 : index
    %32 = memref.load %arg1[%c10] : memref<16xf32, #tpu.memory_space<smem>>
    %33 = vector.broadcast %32 : f32 to vector<2x128xf32>
    %34 = arith.mulf %31, %33 : vector<2x128xf32>
    %35 = arith.addf %24, %34 : vector<2x128xf32>
    %c3 = arith.constant 3 : index
    %36 = memref.load %arg1[%c3] : memref<16xf32, #tpu.memory_space<smem>>
    %37 = vector.broadcast %36 : f32 to vector<2x128xf32>
    %38 = arith.mulf %0, %37 : vector<2x128xf32>
    %c7 = arith.constant 7 : index
    %39 = memref.load %arg1[%c7] : memref<16xf32, #tpu.memory_space<smem>>
    %40 = vector.broadcast %39 : f32 to vector<2x128xf32>
    %41 = arith.addf %38, %40 : vector<2x128xf32>
    %42 = math.tanh %41 : vector<2x128xf32>
    %c11 = arith.constant 11 : index
    %43 = memref.load %arg1[%c11] : memref<16xf32, #tpu.memory_space<smem>>
    %44 = vector.broadcast %43 : f32 to vector<2x128xf32>
    %45 = arith.mulf %42, %44 : vector<2x128xf32>
    %46 = arith.addf %35, %45 : vector<2x128xf32>
    %c0_2 = arith.constant 0 : index
    %c0_3 = arith.constant 0 : index
    %47 = vector.load %arg3[%c0_2, %c0_3] : memref<2x128xf32, #tpu.memory_space<vmem>>, vector<2x128xf32>
    tpu.vector_store %arg3[%c0_2, %c0_3], %46 {strides = array<i32>} : memref<2x128xf32, #tpu.memory_space<vmem>>, vector<2x128xf32>,
    return
  }
  func.func @transform_0(%arg0: i32, %arg1: memref<16xf32, #tpu.memory_space<smem>>) -> (i32, i32) {
    %c0_i32 = arith.constant 0 : i32
    %c0_i32_0 = arith.constant 0 : i32
    return %arg0, %c0_i32 : i32, i32
  }
  func.func @transform_1(%arg0: i32, %arg1: memref<16xf32, #tpu.memory_space<smem>>) -> (i32, i32) {
    %c0_i32 = arith.constant 0 : i32
    %c0_i32_0 = arith.constant 0 : i32
    return %arg0, %c0_i32 : i32, i32
  }
}

</mosaic_0001>

<llo_original>
// kernel: tpu_custom_call.1
$region0: #{tpu_custom_call.1}
  #allocation0 [shape = 'u32[]', space=smem, size = 0x4, offset = 0x4, fixed_abs, tag = 'smem constant byte address 0x4 - core index']
  #allocation1 [shape = 'u32[144,128]{1,0:T(1,128)}', space=vmem, size = 0x12000, scoped, tag = 'internal scratch']
  #allocation2 [shape = 's32[1]{0}', space=sflag, size = 0x4, scoped, tag = 'scoped memory for tpu_custom_call.1']
  #allocation3 [shape = 'u8[512]{0}', space=smem, size = 0x200, scoped, tag = 'prefetched SMEM operand 0']
  %s0 = inlined_call_operand.hbm [shape: f32[16], index: 0, kind: input, shape index: {}]
  %s1 = inlined_call_operand.hbm [shape: f32[2,128], index: 1, kind: input, shape index: {}]
  %s2 = inlined_call_operand.hbm [shape: f32[2,128], index: 2, kind: output, shape index: {}]
  %s3 = sld [smem:[#allocation0]]
  $region18: #{tpu_custom_call.1} parent=0
    _
  %s5 = ssub.s32 1, %s3
  %s6 = scalar_select 0, %s5, %s3
  %8 = dma.hbm_to_smem %s0, 16, [#allocation3], [#allocation2]
  %9 = dma.done [#allocation2], 16
  %10 = sfence
  $region1: #{tpu_custom_call.1} parent=0
    #allocation4 [shape = 'u8[1024]{0}', space=vmem, size = 0x400, scoped, tag = 'input window, operand 1, single buffered']
    #allocation5 [shape = 's32[1]{0}', space=sflag, size = 0x4, scoped, tag = 'scoped memory for tpu_custom_call.1']
    #allocation6 [shape = 's32[1]{0}', space=sflag, size = 0x4, scoped, tag = 'scoped memory for tpu_custom_call.1']
    #allocation7 [shape = 'u8[1024]{0}', space=vmem, size = 0x400, scoped, tag = 'output window, operand 0, single buffered']
    %11 = vsyncpa [#allocation5], 0
    %12 = vsyncpa [#allocation6], 0
    // Predicated region
    $region2: #{tpu_custom_call.1} parent=1 // pred_check
      _
    $region3: #{tpu_custom_call.1} parent=1 // pred_check_branch
      %14 = sbr.rel (0) target = $region5
    $region4: #{tpu_custom_call.1} parent=1 // pred_region
      %s16 = ssub.s32 32, 32
      %17 = vsyncadd [#allocation5], %s16
      %s19 = sshll.u32 [#allocation4], 4
      %s20 = int_to_ptr.vmem [resolvable:$true] %s19
      %22 = dma.hbm_to_vmem [thread:$0]  %s1, 32, %s20, [#allocation5]
    $region5: #{tpu_custom_call.1} parent=1 // pred_fallthru
      _
    // Predicated region
    $region6: #{tpu_custom_call.1} parent=1 // pred_check
      _
    $region7: #{tpu_custom_call.1} parent=1 // pred_check_branch
      %24 = sbr.rel (0) target = $region9
    $region8: #{tpu_custom_call.1} parent=1 // pred_region
      %25 = dma.done [#allocation5], 32
    $region9: #{tpu_custom_call.1} parent=1 // pred_fallthru
      _
    %v26 = vld [vmem:[#allocation4] sm:$0x3]
    %s27 = sld [smem:[#allocation3]]
    %v28 = vstv %s27
    %v29 = vmul.f32 %v26, %v28
    %s30 = sld [smem:[#allocation3 + $0x4]]
    %v31 = vstv %s30
    %v32 = vadd.f32 %v29, %v31
    %v33 = vtanh.pop %v32
    %s34 = sld [smem:[#allocation3 + $0x8]]
    %v35 = vstv %s34
    %v36 = vmul.f32 %v33, %v35
    %s37 = sld [smem:[#allocation3 + $0xc]]
    %v38 = vstv %s37
    %v39 = vadd.f32 %v36, %v38
    %s40 = sld [smem:[#allocation3 + $0x1]]
    %v41 = vstv %s40
    %v42 = vmul.f32 %v26, %v41
    %s43 = sld [smem:[#allocation3 + $0x5]]
    %v44 = vstv %s43
    %v45 = vadd.f32 %v42, %v44
    %v46 = vtanh.pop %v45
    %s47 = sld [smem:[#allocation3 + $0x9]]
    %v48 = vstv %s47
    %v49 = vmul.f32 %v46, %v48
    %v50 = vadd.f32 %v39, %v49
    %s51 = sld [smem:[#allocation3 + $0x2]]
    %v52 = vstv %s51
    %v53 = vmul.f32 %v26, %v52
    %s54 = sld [smem:[#allocation3 + $0x6]]
    %v55 = vstv %s54
    %v56 = vadd.f32 %v53, %v55
    %v57 = vtanh.pop %v56
    %s58 = sld [smem:[#allocation3 + $0xa]]
    %v59 = vstv %s58
    %v60 = vmul.f32 %v57, %v59
    %v61 = vadd.f32 %v50, %v60
    %s62 = sld [smem:[#allocation3 + $0x3]]
    %v63 = vstv %s62
    %v64 = vmul.f32 %v26, %v63
    %s65 = sld [smem:[#allocation3 + $0x7]]
    %v66 = vstv %s65
    %v67 = vadd.f32 %v64, %v66
    %v68 = vtanh.pop %v67
    %s69 = sld [smem:[#allocation3 + $0xb]]
    %v70 = vstv %s69
    %v71 = vmul.f32 %v68, %v70
    %v72 = vadd.f32 %v61, %v71
    %73 = vst [vmem:[#allocation7] sm:$0x3] %v72
    // Predicated region
    $region10: #{tpu_custom_call.1} parent=1 // pred_check
      _
    $region11: #{tpu_custom_call.1} parent=1 // pred_check_branch
      %75 = sbr.rel (0) target = $region13
    $region12: #{tpu_custom_call.1} parent=1 // pred_region
      %s77 = ssub.s32 32, 32
      %78 = vsyncadd [#allocation6], %s77
      %s80 = sshll.u32 [#allocation7], 4
      %s81 = int_to_ptr.vmem [resolvable:$true] %s80
      %83 = dma.vmem_to_hbm [thread:$0]  %s81, 32, %s2, [#allocation6]
    $region13: #{tpu_custom_call.1} parent=1 // pred_fallthru
      _
    // Predicated region
    $region14: #{tpu_custom_call.1} parent=1 // pred_check
      _
    $region15: #{tpu_custom_call.1} parent=1 // pred_check_branch
      %85 = sbr.rel (0) target = $region17
    $region16: #{tpu_custom_call.1} parent=1 // pred_region
      %86 = dma.done [#allocation6], 32
    $region17: #{tpu_custom_call.1} parent=1 // pred_fallthru
      _
    %87 = vsyncpa [#allocation5], 1
    %88 = vsyncpa [#allocation6], 1

</llo_original>
